<compile_context>
chip_gen: v7x
topology: tpu7x:2x2x1
jax: 0.10.0
libtpu: 0.0.40
codegen_flags: <defaults>
</compile_context>

<pallas_src>
import functools

import jax
import jax.numpy as jnp
from jax.experimental import pallas as pl
from jax.experimental.pallas import tpu as pltpu


# Sobel taps used by the PyTorch module (cross-correlation, same as F.conv2d).
_MH = ((-1.0, 0.0, 1.0),
       (-2.0, 0.0, 2.0),
       (-1.0, 0.0, 1.0))
_MV = ((1.0, 2.0, 1.0),
       (0.0, 0.0, 0.0),
       (-1.0, -2.0, -1.0))

# Interior offset of the staged plane inside the scratch canvas: a multiple of
# the native (8, 128) tile so the interior stores are fully aligned vector
# stores, while +-1 shifted reads stay in-bounds (their boundary row/col is
# masked in registers, so the canvas never needs to be zero-initialized).
_R0 = 8
_C0 = 128


def _grad_mse_kernel(x_ref, t_ref, w_ref, out_ref, pad_h_ref, pad_v_ref, *, H, W):
    f32 = jnp.float32
    w = w_ref[0, 0, :, :].astype(f32)                       # (H, W), loaded once

    # Boundary masks replacing the zero-halo ring of the padded convolution.
    row = jax.lax.broadcasted_iota(jnp.int32, (H, W), 0)
    col = jax.lax.broadcasted_iota(jnp.int32, (H, W), 1)
    not_top = row > 0
    not_bot = row < H - 1
    not_left = col > 0
    not_right = col < W - 1
    zero = jnp.zeros((H, W), f32)

    def channel_sum(ch, pad_ref, horizontal):
        # d = x - t for this channel, staged into the canvas interior.
        d = (x_ref[0, ch, :, :].astype(f32)
             - t_ref[0, ch, :, :].astype(f32))
        pad_ref[_R0:_R0 + H, _C0:_C0 + W] = d               # aligned interior store

        # Row (sublane-direction) pass: lane-aligned shifted reads, boundary
        # rows masked in registers (canvas halo content is never read unmasked).
        up = jnp.where(not_top, pad_ref[_R0 - 1:_R0 - 1 + H, _C0:_C0 + W], zero)
        dn = jnp.where(not_bot, pad_ref[_R0 + 1:_R0 + 1 + H, _C0:_C0 + W], zero)
        # MH: vertical smooth [1,2,1];  MV: vertical derivative [1,0,-1].
        s = (up + 2.0 * d + dn) if horizontal else (up - dn)

        pad_ref[_R0:_R0 + H, _C0:_C0 + W] = s               # reuse slot for s

        # Column (lane-direction) pass: the only two lane-shifted reads.
        lt = jnp.where(not_left, pad_ref[_R0:_R0 + H, _C0 - 1:_C0 - 1 + W], zero)
        rt = jnp.where(not_right, pad_ref[_R0:_R0 + H, _C0 + 1:_C0 + 1 + W], zero)
        # MH: horizontal derivative [-1,0,1];  MV: horizontal smooth [1,2,1].
        g = (rt - lt) if horizontal else (lt + 2.0 * s + rt)

        wg = w * g
        return jnp.sum(wg * wg)

    sh = channel_sum(0, pad_h_ref, True)    # MH stencil on channel 0
    sv = channel_sum(1, pad_v_ref, False)   # MV stencil on channel 1

    # Lane-dense per-step partials; the wrapper reads element [0, 0] per tile.
    out_ref[0, 0, :, :] = jnp.full((8, 128), sh, dtype=f32)
    out_ref[0, 1, :, :] = jnp.full((8, 128), sv, dtype=f32)


def _pick_vmem_limit():
    """Generation-aware scoped-VMEM limit with compiler headroom."""
    phys = None
    try:
        phys = getattr(pltpu.get_tpu_info(), "vmem_capacity_bytes", None)
    except Exception:
        phys = None
    if not phys:
        phys = 64 * 1024 * 1024                       # conservative fallback
    # ~48 MiB on a 64 MiB part (v7x), ~100 MiB on 128 MiB parts (v5e/v6e).
    return max(32 * 1024 * 1024,
               min(phys - 16 * 1024 * 1024, 100 * 1024 * 1024))


def grad_mse(inputs: jax.Array, targets: jax.Array, weights: jax.Array) -> jax.Array:
    """GradMSE forward.  inputs/targets: (N, 2, H, W); weights: (N, 1, H, W)."""
    N, C, H, W = inputs.shape
    assert C == 2, "GradMSE expects Nx2xHxW inputs"
    assert targets.shape == inputs.shape
    assert weights.shape == (N, 1, H, W)
    assert H >= 2 and W >= 2

    kernel = functools.partial(_grad_mse_kernel, H=H, W=W)

    # TODO(synk): for H*W large enough that whole-plane double-buffered blocks
    # exceed the per-chip VMEM budget (~1024^2 on v7x), add an inner row-tiled
    # grid axis (256-512 rows, multiple of 8) with a 1-row halo carried in scratch.
    partials = pl.pallas_call(
        kernel,
        out_shape=jax.ShapeDtypeStruct((N, 2, 8, 128), jnp.float32),
        grid_spec=pltpu.PrefetchScalarGridSpec(
            num_scalar_prefetch=0,
            grid=(N,),
            in_specs=[
                pl.BlockSpec((1, 2, H, W), lambda n: (n, 0, 0, 0)),
                pl.BlockSpec((1, 2, H, W), lambda n: (n, 0, 0, 0)),
                pl.BlockSpec((1, 1, H, W), lambda n: (n, 0, 0, 0)),
            ],
            out_specs=pl.BlockSpec((1, 2, 8, 128), lambda n: (n, 0, 0, 0)),
            scratch_shapes=[
                pltpu.VMEM((H + 16, W + 2 * 128), jnp.float32),   # channel-0 canvas
                pltpu.VMEM((H + 16, W + 2 * 128), jnp.float32),   # channel-1 canvas
            ],
        ),
        compiler_params=pltpu.CompilerParams(
            # No state carried across grid steps (boundaries are register-masked),
            # so the batch axis is safely megacore-parallel on v7x.
            dimension_semantics=("parallel",),
            vmem_limit_bytes=_pick_vmem_limit(),
        ),
    )(inputs, targets, weights)

    per_batch = partials[:, :, 0, 0]                   # (N, 2) partial sums
    denom = jnp.float32(N * H * W)                     # numel of each Nx1xHxW operand
    per_term = jnp.sum(per_batch, axis=0) / denom      # (2,) = [mse_h, mse_v]
    return per_term[0] + per_term[1]


def _reference(inputs, targets, weights):
    """Pure-JAX reference mirroring the PyTorch module."""
    mh = jnp.array(_MH, jnp.float32)
    mv = jnp.array(_MV, jnp.float32)

    def conv(x, k):   # x: (N, H, W); zero-padded 3x3 cross-correlation
        return jax.lax.conv_general_dilated(
            x[:, None, :, :], k[None, None, :, :],
            window_strides=(1, 1), padding=((1, 1), (1, 1)),
            dimension_numbers=("NCHW", "OIHW", "NCHW"))[:, 0]

    dh = conv(inputs[:, 0] - targets[:, 0], mh)
    dv = conv(inputs[:, 1] - targets[:, 1], mv)
    w = weights[:, 0]
    return jnp.mean((w * dh) ** 2) + jnp.mean((w * dv) ** 2)


if __name__ == "__main__":
    key = jax.random.PRNGKey(0)
    k1, k2, k3 = jax.random.split(key, 3)

    N, H, W = 2, 16, 16
    inputs = jax.random.normal(k1, (N, 2, H, W), dtype=jnp.float32)
    targets = jax.random.normal(k2, (N, 2, H, W), dtype=jnp.float32)
    weights = jax.random.uniform(k3, (N, 1, H, W), dtype=jnp.float32)

    loss = jax.block_until_ready(grad_mse(inputs, targets, weights))

    ref = jax.block_until_ready(_reference(inputs, targets, weights))
    assert jnp.allclose(loss, ref, rtol=1e-4, atol=1e-6), (loss, ref)

    print("KERNEL_OK")
</pallas_src>

<mosaic_0001>
module attributes {stable_mosaic.version = 11 : i64} {
  func.func @_grad_mse_kernel(%arg0: i32, %arg1: memref<1x2x16x16xf32, #tpu.memory_space<vmem>>, %arg2: memref<1x2x16x16xf32, #tpu.memory_space<vmem>>, %arg3: memref<1x1x16x16xf32, #tpu.memory_space<vmem>>, %arg4: memref<1x2x8x128xf32, #tpu.memory_space<vmem>>, %arg5: memref<32x272xf32, #tpu.memory_space<vmem>>, %arg6: memref<32x272xf32, #tpu.memory_space<vmem>>) attributes {dimension_semantics = [#tpu.dimension_semantics<parallel>], iteration_bounds = array<i64: 2>, scalar_prefetch = 0 : i64, scratch_operands = 2 : i64, tpu.core_type = #tpu.core_type<tc>, window_params = [{transform_indices = @transform_0, window_bounds = array<i64: 1, 2, 16, 16>}, {transform_indices = @transform_1, window_bounds = array<i64: 1, 2, 16, 16>}, {transform_indices = @transform_2, window_bounds = array<i64: 1, 1, 16, 16>}, {transform_indices = @transform_3, window_bounds = array<i64: 1, 2, 8, 128>}]} {
    %c0 = arith.constant 0 : index
    %c0_0 = arith.constant 0 : index
    %c0_1 = arith.constant 0 : index
    %c0_2 = arith.constant 0 : index
    %0 = vector.load %arg3[%c0, %c0_0, %c0_1, %c0_2] : memref<1x1x16x16xf32, #tpu.memory_space<vmem>>, vector<1x1x16x16xf32>
    %1 = vector.shape_cast %0 : vector<1x1x16x16xf32> to vector<16x16xf32>
    %2 = tpu.iota {dimensions = array<i32: 0>} : vector<16x16xi32>
    %3 = tpu.iota {dimensions = array<i32: 1>} : vector<16x16xi32>
    %c0_i32 = arith.constant 0 : i32
    %4 = vector.broadcast %c0_i32 : i32 to vector<16x16xi32>
    %5 = arith.cmpi sgt, %2, %4 : vector<16x16xi32>
    %c15_i32 = arith.constant 15 : i32
    %6 = vector.broadcast %c15_i32 : i32 to vector<16x16xi32>
    %7 = arith.cmpi slt, %2, %6 : vector<16x16xi32>
    %c0_i32_3 = arith.constant 0 : i32
    %8 = vector.broadcast %c0_i32_3 : i32 to vector<16x16xi32>
    %9 = arith.cmpi sgt, %3, %8 : vector<16x16xi32>
    %c15_i32_4 = arith.constant 15 : i32
    %10 = vector.broadcast %c15_i32_4 : i32 to vector<16x16xi32>
    %11 = arith.cmpi slt, %3, %10 : vector<16x16xi32>
    %cst = arith.constant 0.000000e+00 : f32
    %12 = vector.broadcast %cst : f32 to vector<16x16xf32>
    %c0_5 = arith.constant 0 : index
    %c0_6 = arith.constant 0 : index
    %c0_7 = arith.constant 0 : index
    %c0_8 = arith.constant 0 : index
    %13 = vector.load %arg1[%c0_5, %c0_6, %c0_7, %c0_8] : memref<1x2x16x16xf32, #tpu.memory_space<vmem>>, vector<1x1x16x16xf32>
    %14 = vector.shape_cast %13 : vector<1x1x16x16xf32> to vector<16x16xf32>
    %c0_9 = arith.constant 0 : index
    %c0_10 = arith.constant 0 : index
    %c0_11 = arith.constant 0 : index
    %c0_12 = arith.constant 0 : index
    %15 = vector.load %arg2[%c0_9, %c0_10, %c0_11, %c0_12] : memref<1x2x16x16xf32, #tpu.memory_space<vmem>>, vector<1x1x16x16xf32>
    %16 = vector.shape_cast %15 : vector<1x1x16x16xf32> to vector<16x16xf32>
    %17 = arith.subf %14, %16 : vector<16x16xf32>
    %c8 = arith.constant 8 : index
    %c128 = arith.constant 128 : index
    %18 = vector.load %arg5[%c8, %c128] : memref<32x272xf32, #tpu.memory_space<vmem>>, vector<16x16xf32>
    tpu.vector_store %arg5[%c8, %c128], %17 {strides = array<i32>} : memref<32x272xf32, #tpu.memory_space<vmem>>, vector<16x16xf32>,
    %c7 = arith.constant 7 : index
    %c128_13 = arith.constant 128 : index
    %19 = vector.load %arg5[%c7, %c128_13] : memref<32x272xf32, #tpu.memory_space<vmem>>, vector<16x16xf32>
    %20 = arith.select %5, %19, %12 : vector<16x16xi1>, vector<16x16xf32>
    %c9 = arith.constant 9 : index
    %c128_14 = arith.constant 128 : index
    %21 = vector.load %arg5[%c9, %c128_14] : memref<32x272xf32, #tpu.memory_space<vmem>>, vector<16x16xf32>
    %22 = arith.select %7, %21, %12 : vector<16x16xi1>, vector<16x16xf32>
    %cst_15 = arith.constant 2.000000e+00 : f32
    %23 = vector.broadcast %cst_15 : f32 to vector<16x16xf32>
    %24 = arith.mulf %23, %17 : vector<16x16xf32>
    %25 = arith.addf %20, %24 : vector<16x16xf32>
    %26 = arith.addf %25, %22 : vector<16x16xf32>
    %c8_16 = arith.constant 8 : index
    %c128_17 = arith.constant 128 : index
    %27 = vector.load %arg5[%c8_16, %c128_17] : memref<32x272xf32, #tpu.memory_space<vmem>>, vector<16x16xf32>
    tpu.vector_store %arg5[%c8_16, %c128_17], %26 {strides = array<i32>} : memref<32x272xf32, #tpu.memory_space<vmem>>, vector<16x16xf32>,
    %c8_18 = arith.constant 8 : index
    %c127 = arith.constant 127 : index
    %28 = vector.load %arg5[%c8_18, %c127] : memref<32x272xf32, #tpu.memory_space<vmem>>, vector<16x16xf32>
    %29 = arith.select %9, %28, %12 : vector<16x16xi1>, vector<16x16xf32>
    %c8_19 = arith.constant 8 : index
    %c129 = arith.constant 129 : index
    %30 = vector.load %arg5[%c8_19, %c129] : memref<32x272xf32, #tpu.memory_space<vmem>>, vector<16x16xf32>
    %31 = arith.select %11, %30, %12 : vector<16x16xi1>, vector<16x16xf32>
    %32 = arith.subf %31, %29 : vector<16x16xf32>
    %33 = arith.mulf %1, %32 : vector<16x16xf32>
    %34 = arith.mulf %33, %33 : vector<16x16xf32>
    %35 = vector.shape_cast %34 : vector<16x16xf32> to vector<1x16x16xf32>
    %cst_20 = arith.constant dense<0.000000e+00> : vector<1xf32>
    %36 = vector.multi_reduction <add>, %35, %cst_20 [1, 2] : vector<1x16x16xf32> to vector<1xf32>
    %37 = vector.shape_cast %36 : vector<1xf32> to vector<1x1x1xf32>
    %38 = vector.extract %37[0, 0, 0] : f32 from vector<1x1x1xf32>
    %c0_21 = arith.constant 0 : index
    %c1 = arith.constant 1 : index
    %c0_22 = arith.constant 0 : index
    %c0_23 = arith.constant 0 : index
    %39 = vector.load %arg1[%c0_21, %c1, %c0_22, %c0_23] : memref<1x2x16x16xf32, #tpu.memory_space<vmem>>, vector<1x1x16x16xf32>
    %40 = vector.shape_cast %39 : vector<1x1x16x16xf32> to vector<16x16xf32>
    %c0_24 = arith.constant 0 : index
    %c1_25 = arith.constant 1 : index
    %c0_26 = arith.constant 0 : index
    %c0_27 = arith.constant 0 : index
    %41 = vector.load %arg2[%c0_24, %c1_25, %c0_26, %c0_27] : memref<1x2x16x16xf32, #tpu.memory_space<vmem>>, vector<1x1x16x16xf32>
    %42 = vector.shape_cast %41 : vector<1x1x16x16xf32> to vector<16x16xf32>
    %43 = arith.subf %40, %42 : vector<16x16xf32>
    %c8_28 = arith.constant 8 : index
    %c128_29 = arith.constant 128 : index
    %44 = vector.load %arg6[%c8_28, %c128_29] : memref<32x272xf32, #tpu.memory_space<vmem>>, vector<16x16xf32>
    tpu.vector_store %arg6[%c8_28, %c128_29], %43 {strides = array<i32>} : memref<32x272xf32, #tpu.memory_space<vmem>>, vector<16x16xf32>,
    %c7_30 = arith.constant 7 : index
    %c128_31 = arith.constant 128 : index
    %45 = vector.load %arg6[%c7_30, %c128_31] : memref<32x272xf32, #tpu.memory_space<vmem>>, vector<16x16xf32>
    %46 = arith.select %5, %45, %12 : vector<16x16xi1>, vector<16x16xf32>
    %c9_32 = arith.constant 9 : index
    %c128_33 = arith.constant 128 : index
    %47 = vector.load %arg6[%c9_32, %c128_33] : memref<32x272xf32, #tpu.memory_space<vmem>>, vector<16x16xf32>
    %48 = arith.select %7, %47, %12 : vector<16x16xi1>, vector<16x16xf32>
    %49 = arith.subf %46, %48 : vector<16x16xf32>
    %c8_34 = arith.constant 8 : index
    %c128_35 = arith.constant 128 : index
    %50 = vector.load %arg6[%c8_34, %c128_35] : memref<32x272xf32, #tpu.memory_space<vmem>>, vector<16x16xf32>
    tpu.vector_store %arg6[%c8_34, %c128_35], %49 {strides = array<i32>} : memref<32x272xf32, #tpu.memory_space<vmem>>, vector<16x16xf32>,
    %c8_36 = arith.constant 8 : index
    %c127_37 = arith.constant 127 : index
    %51 = vector.load %arg6[%c8_36, %c127_37] : memref<32x272xf32, #tpu.memory_space<vmem>>, vector<16x16xf32>
    %52 = arith.select %9, %51, %12 : vector<16x16xi1>, vector<16x16xf32>
    %c8_38 = arith.constant 8 : index
    %c129_39 = arith.constant 129 : index
    %53 = vector.load %arg6[%c8_38, %c129_39] : memref<32x272xf32, #tpu.memory_space<vmem>>, vector<16x16xf32>
    %54 = arith.select %11, %53, %12 : vector<16x16xi1>, vector<16x16xf32>
    %cst_40 = arith.constant 2.000000e+00 : f32
    %55 = vector.broadcast %cst_40 : f32 to vector<16x16xf32>
    %56 = arith.mulf %55, %49 : vector<16x16xf32>
    %57 = arith.addf %52, %56 : vector<16x16xf32>
    %58 = arith.addf %57, %54 : vector<16x16xf32>
    %59 = arith.mulf %1, %58 : vector<16x16xf32>
    %60 = arith.mulf %59, %59 : vector<16x16xf32>
    %61 = vector.shape_cast %60 : vector<16x16xf32> to vector<1x16x16xf32>
    %cst_41 = arith.constant dense<0.000000e+00> : vector<1xf32>
    %62 = vector.multi_reduction <add>, %61, %cst_41 [1, 2] : vector<1x16x16xf32> to vector<1xf32>
    %63 = vector.shape_cast %62 : vector<1xf32> to vector<1x1x1xf32>
    %64 = vector.extract %63[0, 0, 0] : f32 from vector<1x1x1xf32>
    %65 = vector.broadcast %38 : f32 to vector<8x128xf32>
    %c0_42 = arith.constant 0 : index
    %c0_43 = arith.constant 0 : index
    %c0_44 = arith.constant 0 : index
    %c0_45 = arith.constant 0 : index
    %66 = vector.load %arg4[%c0_42, %c0_43, %c0_44, %c0_45] : memref<1x2x8x128xf32, #tpu.memory_space<vmem>>, vector<1x1x8x128xf32>
    %67 = vector.shape_cast %66 : vector<1x1x8x128xf32> to vector<8x128xf32>
    %68 = vector.shape_cast %65 : vector<8x128xf32> to vector<1x1x8x128xf32>
    tpu.vector_store %arg4[%c0_42, %c0_43, %c0_44, %c0_45], %68 {strides = array<i32>} : memref<1x2x8x128xf32, #tpu.memory_space<vmem>>, vector<1x1x8x128xf32>,
    %69 = vector.broadcast %64 : f32 to vector<8x128xf32>
    %c0_46 = arith.constant 0 : index
    %c1_47 = arith.constant 1 : index
    %c0_48 = arith.constant 0 : index
    %c0_49 = arith.constant 0 : index
    %70 = vector.load %arg4[%c0_46, %c1_47, %c0_48, %c0_49] : memref<1x2x8x128xf32, #tpu.memory_space<vmem>>, vector<1x1x8x128xf32>
    %71 = vector.shape_cast %70 : vector<1x1x8x128xf32> to vector<8x128xf32>
    %72 = vector.shape_cast %69 : vector<8x128xf32> to vector<1x1x8x128xf32>
    tpu.vector_store %arg4[%c0_46, %c1_47, %c0_48, %c0_49], %72 {strides = array<i32>} : memref<1x2x8x128xf32, #tpu.memory_space<vmem>>, vector<1x1x8x128xf32>,
    return
  }
  func.func @transform_0(%arg0: i32) -> (i32, i32, i32, i32) {
    %c0_i32 = arith.constant 0 : i32
    %c0_i32_0 = arith.constant 0 : i32
    %c0_i32_1 = arith.constant 0 : i32
    %c0_i32_2 = arith.constant 0 : i32
    return %arg0, %c0_i32, %c0_i32_0, %c0_i32_1 : i32, i32, i32, i32
  }
  func.func @transform_1(%arg0: i32) -> (i32, i32, i32, i32) {
    %c0_i32 = arith.constant 0 : i32
    %c0_i32_0 = arith.constant 0 : i32
    %c0_i32_1 = arith.constant 0 : i32
    %c0_i32_2 = arith.constant 0 : i32
    return %arg0, %c0_i32, %c0_i32_0, %c0_i32_1 : i32, i32, i32, i32
  }
  func.func @transform_2(%arg0: i32) -> (i32, i32, i32, i32) {
    %c0_i32 = arith.constant 0 : i32
    %c0_i32_0 = arith.constant 0 : i32
    %c0_i32_1 = arith.constant 0 : i32
    %c0_i32_2 = arith.constant 0 : i32
    return %arg0, %c0_i32, %c0_i32_0, %c0_i32_1 : i32, i32, i32, i32
  }
  func.func @transform_3(%arg0: i32) -> (i32, i32, i32, i32) {
    %c0_i32 = arith.constant 0 : i32
    %c0_i32_0 = arith.constant 0 : i32
    %c0_i32_1 = arith.constant 0 : i32
    %c0_i32_2 = arith.constant 0 : i32
    return %arg0, %c0_i32, %c0_i32_0, %c0_i32_1 : i32, i32, i32, i32
  }
}

</mosaic_0001>

<llo_original>
// kernel: tpu_custom_call.1
$region0: #{tpu_custom_call.1}
  #allocation0 [shape = 'u32[]', space=smem, size = 0x4, offset = 0x4, fixed_abs, tag = 'smem constant byte address 0x4 - core index']
  #allocation1 [shape = 'u32[144,128]{1,0:T(1,128)}', space=vmem, size = 0x12000, scoped, tag = 'internal scratch']
  #allocation2 [shape = 'f32[32,272]{1,0:T(8,128)}', space=vmem, size = 0xc000, scoped, tag = 'scratch operand']
  #allocation3 [shape = 'f32[32,272]{1,0:T(8,128)}', space=vmem, size = 0xc000, scoped, tag = 'scratch operand']
  %s0 = inlined_call_operand.hbm [shape: f32[2,2,16,16], index: 0, kind: input, shape index: {}]
  %s1 = inlined_call_operand.hbm [shape: f32[2,2,16,16], index: 1, kind: input, shape index: {}]
  %s2 = inlined_call_operand.hbm [shape: f32[2,1,16,16], index: 2, kind: input, shape index: {}]
  %s3 = inlined_call_operand.hbm [shape: f32[2,2,8,128], index: 3, kind: output, shape index: {}]
  %s4 = sld [smem:[#allocation0]]
  $region57: #{tpu_custom_call.1} parent=0
    _
  %s6 = ssub.s32 1, %s4
  %s7 = scalar_select 0, %s6, %s4
  $region1: #{tpu_custom_call.1} parent=0
    #allocation4 [shape = 'u8[32768]{0}', space=vmem, size = 0x8000, scoped, tag = 'input window, operand 0']
    #allocation5 [shape = 's32[2]{0}', space=sflag, size = 0x8, scoped, tag = 'scoped memory for tpu_custom_call.1']
    #allocation6 [shape = 's32[2]{0}', space=sflag, size = 0x8, scoped, tag = 'scoped memory for tpu_custom_call.1']
    #allocation7 [shape = 'u8[32768]{0}', space=vmem, size = 0x8000, scoped, tag = 'input window, operand 1']
    #allocation8 [shape = 's32[2]{0}', space=sflag, size = 0x8, scoped, tag = 'scoped memory for tpu_custom_call.1']
    #allocation9 [shape = 'u8[16384]{0}', space=vmem, size = 0x4000, scoped, tag = 'input window, operand 2']
    #allocation10 [shape = 'u8[16384]{0}', space=vmem, size = 0x4000, scoped, tag = 'output window, operand 0']
    %8 = vsyncpa [#allocation5], 0
    %s9 = scalar_lea.sflag [#allocation5], 1
    %10 = vsyncpa %s9, 0
    %11 = vsyncpa [#allocation8], 0
    %s12 = scalar_lea.sflag [#allocation8], 1
    %13 = vsyncpa %s12, 0
    %14 = vsyncpa [#allocation6], 0
    %s15 = scalar_lea.sflag [#allocation6], 1
    %16 = vsyncpa %s15, 0
    loop: start=0, step=1, limit=4
    $region2: #{tpu_custom_call.1} parent=1 // loop_pre_header
      _
    $region3: #{tpu_custom_call.1} parent=1 // loop_header
      %s18 = sphi 0, %s22
      %p19 = scmp.ge.s32.totalorder %s18, 4
      %s28 = sphi 0, %s30
      %s31 = sphi 0, %s28
      %s32 = sphi 0, %s31
      %s48 = sphi 0, %s32
      %s54 = sphi 0, %s56
      %s57 = sphi 0, %s54
      %s58 = sphi 0, %s57
      %s74 = sphi 0, %s58
      %s80 = sphi 0, %s82
      %s83 = sphi 0, %s80
      %s84 = sphi 0, %s83
      %s100 = sphi 0, %s84
      %s106 = sphi 0, %s108
      %s109 = sphi 0, %s106
      %s110 = sphi 0, %s109
      %s126 = sphi 0, %s110
    $region4: #{tpu_custom_call.1} parent=1 // loop_header_branch
      %21 = sbr.rel (%p19) target = $region8
    $region5: #{tpu_custom_call.1} parent=1 // loop_body
      %s23 = ssub.s32 %s18, 1
      %s24 = ssub.s32 %s18, 2
      %s25 = sadd.s32 %s18, 1
      %s26 = ssub.s32 %s18, %s25
      %p27 = scmp.eq.s32.totalorder %s26, 0
      %s29 = sadd.s32 %s28, 1
      %s30 = scalar_select %p27, %s28, %s29
      %p33 = pneg %p27
      %p34 = scmp.eq.s32.totalorder %s18, 1
      %p35 = por %p33, %p34
      %p36 = scmp.ne.s32.totalorder %s28, %s31
      %p37 = scmp.eq.s32.totalorder %s18, 0
      %p38 = por %p36, %p37
      %p39 = scmp.ne.s32.totalorder %s28, %s31
      %p40 = scmp.eq.s32.totalorder %s23, 1
      %p41 = por %p39, %p40
      %p42 = scmp.ne.s32.totalorder %s31, %s32
      %p43 = scmp.eq.s32.totalorder %s23, 0
      %p44 = por %p42, %p43
      %p45 = scmp.ne.s32.totalorder %s31, %s32
      %p46 = scmp.eq.s32.totalorder %s24, 1
      %p47 = por %p45, %p46
      %p49 = scmp.ne.s32.totalorder %s32, %s48
      %p50 = scmp.eq.s32.totalorder %s24, 0
      %p51 = por %p49, %p50
      %s52 = ssub.s32 %s18, %s25
      %p53 = scmp.eq.s32.totalorder %s52, 0
      %s55 = sadd.s32 %s54, 1
      %s56 = scalar_select %p53, %s54, %s55
      %p59 = pneg %p53
      %p60 = scmp.eq.s32.totalorder %s18, 1
      %p61 = por %p59, %p60
      %p62 = scmp.ne.s32.totalorder %s54, %s57
      %p63 = scmp.eq.s32.totalorder %s18, 0
      %p64 = por %p62, %p63
      %p65 = scmp.ne.s32.totalorder %s54, %s57
      %p66 = scmp.eq.s32.totalorder %s23, 1
      %p67 = por %p65, %p66
      %p68 = scmp.ne.s32.totalorder %s57, %s58
      %p69 = scmp.eq.s32.totalorder %s23, 0
      %p70 = por %p68, %p69
      %p71 = scmp.ne.s32.totalorder %s57, %s58
      %p72 = scmp.eq.s32.totalorder %s24, 1
      %p73 = por %p71, %p72
      %p75 = scmp.ne.s32.totalorder %s58, %s74
      %p76 = scmp.eq.s32.totalorder %s24, 0
      %p77 = por %p75, %p76
      %s78 = ssub.s32 %s18, %s25
      %p79 = scmp.eq.s32.totalorder %s78, 0
      %s81 = sadd.s32 %s80, 1
      %s82 = scalar_select %p79, %s80, %s81
      %p85 = pneg %p79
      %p86 = scmp.eq.s32.totalorder %s18, 1
      %p87 = por %p85, %p86
      %p88 = scmp.ne.s32.totalorder %s80, %s83
      %p89 = scmp.eq.s32.totalorder %s18, 0
      %p90 = por %p88, %p89
      %p91 = scmp.ne.s32.totalorder %s80, %s83
      %p92 = scmp.eq.s32.totalorder %s23, 1
      %p93 = por %p91, %p92
      %p94 = scmp.ne.s32.totalorder %s83, %s84
      %p95 = scmp.eq.s32.totalorder %s23, 0
      %p96 = por %p94, %p95
      %p97 = scmp.ne.s32.totalorder %s83, %s84
      %p98 = scmp.eq.s32.totalorder %s24, 1
      %p99 = por %p97, %p98
      %p101 = scmp.ne.s32.totalorder %s84, %s100
      %p102 = scmp.eq.s32.totalorder %s24, 0
      %p103 = por %p101, %p102
      %s104 = ssub.s32 %s18, %s25
      %p105 = scmp.eq.s32.totalorder %s104, 0
      %s107 = sadd.s32 %s106, 1
      %s108 = scalar_select %p105, %s106, %s107
      %p111 = pneg %p105
      %p112 = scmp.eq.s32.totalorder %s18, 1
      %p113 = por %p111, %p112
      %p114 = scmp.ne.s32.totalorder %s106, %s109
      %p115 = scmp.eq.s32.totalorder %s18, 0
      %p116 = por %p114, %p115
      %p117 = scmp.ne.s32.totalorder %s106, %s109
      %p118 = scmp.eq.s32.totalorder %s23, 1
      %p119 = por %p117, %p118
      %p120 = scmp.ne.s32.totalorder %s109, %s110
      %p121 = scmp.eq.s32.totalorder %s23, 0
      %p122 = por %p120, %p121
      %p123 = scmp.ne.s32.totalorder %s109, %s110
      %p124 = scmp.eq.s32.totalorder %s24, 1
      %p125 = por %p123, %p124
      %p127 = scmp.ne.s32.totalorder %s110, %s126
      %p128 = scmp.eq.s32.totalorder %s24, 0
      %p129 = por %p127, %p128
      %p130 = scmp.le.s32.totalorder 1, %s18
      %p131 = scmp.lt.s32.totalorder %s18, 3
      %p132 = pnand %p130, %p131
      %p133 = pneg %p132
      // Predicated region
      $region9: #{tpu_custom_call.1} parent=5 // pred_check
        _
      $region10: #{tpu_custom_call.1} parent=5 // pred_check_branch
        %135 = sbr.rel (%p132) target = $region12
      $region11: #{tpu_custom_call.1} parent=5 // pred_region
        %s136 = ssub.s32 %s18, 1
      $region12: #{tpu_custom_call.1} parent=5 // pred_fallthru
        _
      %p137 = scmp.lt.s32.totalorder %s18, 2
      // Predicated region
      $region13: #{tpu_custom_call.1} parent=5 // pred_check
        %p138 = pneg %p137
      $region14: #{tpu_custom_call.1} parent=5 // pred_check_branch
        %140 = sbr.rel (%p138) target = $region16
      $region15: #{tpu_custom_call.1} parent=5 // pred_region
        // Predicated region
        $region17: #{tpu_custom_call.1} parent=15 // pred_check
          %p141 = pneg %p38
        $region18: #{tpu_custom_call.1} parent=15 // pred_check_branch
          %143 = sbr.rel (%p141) target = $region20
        $region19: #{tpu_custom_call.1} parent=15 // pred_region
          %s144 = sand.u32 %s28, 1
          %s145 = scalar_lea.sflag [#allocation5], %s144
          %s146 = sand.u32 %s28, 1
          %s147 = smul.addr %s146, 32
          %s148 = scalar_lea.vmem [#allocation4], %s147
          %s150 = ssub.s32 512, 512
          %151 = vsyncadd %s145, %s150
          %s152 = smul.addr %s18, 4
          %s153 = smul.addr %s152, 128
          %s154 = scalar_lea.hbm %s0, %s153
          %s155 = sshll.u32 %s148, 4
          %s156 = int_to_ptr.vmem [resolvable:$true] %s155
          %161 = dma.hbm_to_vmem [thread:$0]  %s154, 512, %s156, %s145, 128, 128, 8
        $region20: #{tpu_custom_call.1} parent=15 // pred_fallthru
          _
        // Predicated region
        $region21: #{tpu_custom_call.1} parent=15 // pred_check
          %p162 = pneg %p64
        $region22: #{tpu_custom_call.1} parent=15 // pred_check_branch
          %164 = sbr.rel (%p162) target = $region24
        $region23: #{tpu_custom_call.1} parent=15 // pred_region
          %s165 = sand.u32 %s18, 1
          %s166 = scalar_lea.sflag [#allocation8], %s165
          %s167 = sand.u32 %s54, 1
          %s168 = smul.addr %s167, 32
          %s169 = scalar_lea.vmem [#allocation7], %s168
          %s171 = ssub.s32 512, 512
          %172 = vsyncadd %s166, %s171
          %s173 = smul.addr %s18, 4
          %s174 = smul.addr %s173, 128
          %s175 = scalar_lea.hbm %s1, %s174
          %s176 = sshll.u32 %s169, 4
          %s177 = int_to_ptr.vmem [resolvable:$true] %s176
          %182 = dma.hbm_to_vmem [thread:$0]  %s175, 512, %s177, %s166, 128, 128, 8
        $region24: #{tpu_custom_call.1} parent=15 // pred_fallthru
          _
        // Predicated region
        $region25: #{tpu_custom_call.1} parent=15 // pred_check
          %p183 = pneg %p90
        $region26: #{tpu_custom_call.1} parent=15 // pred_check_branch
          %185 = sbr.rel (%p183) target = $region28
        $region27: #{tpu_custom_call.1} parent=15 // pred_region
          %s186 = sand.u32 %s18, 1
          %s187 = scalar_lea.sflag [#allocation8], %s186
          %s188 = sand.u32 %s80, 1
          %s189 = smul.addr %s188, 16
          %s190 = scalar_lea.vmem [#allocation9], %s189
          %s192 = ssub.s32 256, 256
          %193 = vsyncadd %s187, %s192
          %s194 = smul.addr %s18, 2
          %s195 = smul.addr %s194, 128
          %s196 = scalar_lea.hbm %s2, %s195
          %s197 = sshll.u32 %s190, 4
          %s198 = int_to_ptr.vmem [resolvable:$true] %s197
          %203 = dma.hbm_to_vmem [thread:$0]  %s196, 256, %s198, %s187, 128, 128, 8
        $region28: #{tpu_custom_call.1} parent=15 // pred_fallthru
          _
      $region16: #{tpu_custom_call.1} parent=5 // pred_fallthru
        _
      %p204 = scmp.le.s32.totalorder 1, %s18
      %p205 = scmp.lt.s32.totalorder %s18, 3
      %p206 = pnand %p204, %p205
      %p207 = pneg %p206
      // Predicated region
      $region29: #{tpu_custom_call.1} parent=5 // pred_check
        _
      $region30: #{tpu_custom_call.1} parent=5 // pred_check_branch
        %209 = sbr.rel (%p206) target = $region32
      $region31: #{tpu_custom_call.1} parent=5 // pred_region
        %s210 = ssub.s32 %s18, 1
        %s211 = sand.u32 %s31, 1
        %s212 = scalar_lea.sflag [#allocation5], %s211
        %s213 = sand.u32 %s31, 1
        %s214 = smul.addr %s213, 32
        %s215 = scalar_lea.vmem [#allocation4], %s214
        // Predicated region
        $region33: #{tpu_custom_call.1} parent=31 // pred_check
          %p216 = pneg %p44
        $region34: #{tpu_custom_call.1} parent=31 // pred_check_branch
          %218 = sbr.rel (%p216) target = $region36
        $region35: #{tpu_custom_call.1} parent=31 // pred_region
          %219 = dma.done %s212, 512
        $region36: #{tpu_custom_call.1} parent=31 // pred_fallthru
          _
        %s220 = sand.u32 %s23, 1
        %s221 = scalar_lea.sflag [#allocation8], %s220
        %s222 = sand.u32 %s57, 1
        %s223 = smul.addr %s222, 32
        %s224 = scalar_lea.vmem [#allocation7], %s223
        // Predicated region
        $region37: #{tpu_custom_call.1} parent=31 // pred_check
          %p225 = pneg %p70
        $region38: #{tpu_custom_call.1} parent=31 // pred_check_branch
          %227 = sbr.rel (%p225) target = $region40
        $region39: #{tpu_custom_call.1} parent=31 // pred_region
          %228 = dma.done %s221, 512
        $region40: #{tpu_custom_call.1} parent=31 // pred_fallthru
          _
        %s229 = sand.u32 %s23, 1
        %s230 = scalar_lea.sflag [#allocation8], %s229
        %s231 = sand.u32 %s83, 1
        %s232 = smul.addr %s231, 16
        %s233 = scalar_lea.vmem [#allocation9], %s232
        // Predicated region
        $region41: #{tpu_custom_call.1} parent=31 // pred_check
          %p234 = pneg %p96
        $region42: #{tpu_custom_call.1} parent=31 // pred_check_branch
          %236 = sbr.rel (%p234) target = $region44
        $region43: #{tpu_custom_call.1} parent=31 // pred_region
          %237 = dma.done %s230, 256
        $region44: #{tpu_custom_call.1} parent=31 // pred_fallthru
          _
        %s238 = sand.u32 %s31, 1
        %s239 = scalar_lea.sflag [#allocation5], %s238
        %s240 = sand.u32 %s31, 1
        %s241 = smul.addr %s240, 32
        %s242 = scalar_lea.vmem [#allocation4], %s241
        %p243 = pneg %p44
        %p244 = pneg %p41
        %s245 = sand.u32 %s23, 1
        %s246 = scalar_lea.sflag [#allocation8], %s245
        %s247 = sand.u32 %s57, 1
        %s248 = smul.addr %s247, 32
        %s249 = scalar_lea.vmem [#allocation7], %s248
        %p250 = pneg %p70
        %p251 = pneg %p67
        %s252 = sand.u32 %s23, 1
        %s253 = scalar_lea.sflag [#allocation8], %s252
        %s254 = sand.u32 %s83, 1
        %s255 = smul.addr %s254, 16
        %s256 = scalar_lea.vmem [#allocation9], %s255
        %p257 = pneg %p96
        %p258 = pneg %p93
        %p259 = pneg %p122
        %p260 = pneg %p119
        %s261 = sand.u32 %s109, 1
        %s262 = scalar_lea.sflag [#allocation6], %s261
        %s263 = sand.u32 %s109, 1
        %s264 = smul.addr %s263, 16
        %s265 = scalar_lea.vmem [#allocation10], %s264
        %v266 = vld [vmem:[%s233] sm:$0xff]
        %v267 = vld [vmem:[%s233 + $0x8] sm:$0xff]
        %v268 = vlaneseq
        %v269 = vshrl.u32 %v268, 7
        %v270 = vadd.s32 %v269, 8
        %v271 = vlaneseq
        %v272 = vand.u32 %v271, 127
        %vm273 = vcmp.gt.s32.totalorder %v269, 0
        %vm274 = vcmp.gt.s32.totalorder %v270, 0
        %vm275 = vcmp.lt.s32.totalorder %v269, 15
        %vm276 = vcmp.lt.s32.totalorder %v270, 15
        %vm277 = vcmp.gt.s32.totalorder %v272, 0
        %vm278 = vcmp.lt.s32.totalorder %v272, 15
        %v279 = vld [vmem:[%s215] sm:$0xff]
        %v280 = vld [vmem:[%s215 + $0x8] sm:$0xff]
        %v281 = vld [vmem:[%s224] sm:$0xff]
        %v282 = vld [vmem:[%s224 + $0x8] sm:$0xff]
        %v283 = vsub.f32 %v279, %v281
        %v284 = vsub.f32 %v280, %v282
        %vm285 = vcmask 130048
        %286 = vst.msk [vmem:[#allocation2 + $0x20] sm:$0xff] %vm285, %v283
        %287 = vst.msk [vmem:[#allocation2 + $0x38] sm:$0xff] %vm285, %v284
        %v288 = vld [vmem:[#allocation2 + $0x8] sm:$0x80]
        %v289 = vld [vmem:[#allocation2 + $0x20] sm:$0xff]
        %v290 = vld [vmem:[#allocation2 + $0x38] sm:$0x7f]
        %vm294 = vcmask 1040384
        %v295 = vrot.slane %v288, 7
        %v296 = vrot.slane %v289, 7
        %v297 = vsel %vm294, %v295, %v296
        %v298 = vrot.slane %v290, 7
        %v299 = vsel %vm294, %v296, %v298
        %v302 = vsel %vm273, %v297, 0.0
        %v303 = vsel %vm274, %v299, 0.0
        %v304 = vld [vmem:[#allocation2 + $0x20] sm:$0xfe]
        %v305 = vld [vmem:[#allocation2 + $0x38] sm:$0xff]
        %v306 = vld [vmem:[#allocation2 + $0x50] sm:$0x1]
        %vm310 = vcmask 1046528
        %v311 = vrot.slane %v304, 1
        %v312 = vrot.slane %v305, 1
        %v313 = vsel %vm310, %v311, %v312
        %v314 = vrot.slane %v306, 1
        %v315 = vsel %vm310, %v312, %v314
        %v318 = vsel %vm275, %v313, 0.0
        %v319 = vsel %vm276, %v315, 0.0
        %v320 = vmul.f32 %v283, 2.0
        %v321 = vmul.f32 %v284, 2.0
        %v322 = vadd.f32 %v302, %v320
        %v323 = vadd.f32 %v303, %v321
        %v324 = vadd.f32 %v322, %v318
        %v325 = vadd.f32 %v323, %v319
        %326 = vst.msk [vmem:[#allocation2 + $0x20] sm:$0xff] %vm285, %v324
        %327 = vst.msk [vmem:[#allocation2 + $0x38] sm:$0xff] %vm285, %v325
        %v328 = vld [vmem:[#allocation2 + $0x18] sm:$0xff]
        %v329 = vld [vmem:[#allocation2 + $0x20] sm:$0xff]
        %v330 = vld [vmem:[#allocation2 + $0x30] sm:$0xff]
        %v331 = vld [vmem:[#allocation2 + $0x38] sm:$0xff]
        %336 = vrot.lane.b32.xlu0 %v328, 1
        %v337 = vpop.permute.xlu0 %336
        %338 = vrot.lane.b32.xlu0 %v329, 1
        %v339 = vpop.permute.xlu0 %338
        %340 = vrot.lane.b32.xlu0 %v330, 1
        %v341 = vpop.permute.xlu0 %340
        %342 = vrot.lane.b32.xlu0 %v331, 1
        %v343 = vpop.permute.xlu0 %342
        %vm344 = vcmask 7168
        %v345 = vsel %vm344, %v337, %v339
        %v346 = vsel %vm344, %v341, %v343
        %v349 = vsel %vm277, %v345, 0.0
        %v350 = vsel %vm277, %v346, 0.0
        %351 = vrot.lane.b32.xlu0 %v329, 127
        %v352 = vpop.permute.xlu0 %351
        %353 = vrot.lane.b32.xlu0 %v331, 127
        %v354 = vpop.permute.xlu0 %353
        %v357 = vsel %vm278, %v352, 0.0
        %v358 = vsel %vm278, %v354, 0.0
        %v359 = vsub.f32 %v357, %v349
        %v360 = vsub.f32 %v358, %v350
        %v361 = vmul.f32 %v266, %v359
        %v362 = vmul.f32 %v267, %v360
        %v363 = vmul.f32 %v361, %v361
        %v364 = vmul.f32 %v362, %v362
        %v365 = vsel %vm285, %v363, 0.0
        %v366 = vsel %vm285, %v364, 0.0
        %v367 = vadd.f32 %v365, %v366
        %368 = vadd.xlane.f32.xlu0 %v367
        %v369 = vpop.xlane.xlu0 %368
        %v370 = vrot.slane %v369, 4
        %v371 = vadd.f32 %v369, %v370
        %v372 = vrot.slane %v371, 2
        %v373 = vadd.f32 %v371, %v372
        %v374 = vrot.slane %v373, 1
        %v375 = vadd.f32 %v373, %v374
        %s376 = vtos %v375
        %s377 = scalar_lea.vmem %s215, 16 [#allocation4]
        %v378 = vld [vmem:[%s377] sm:$0xff]
        %v379 = vld [vmem:[%s377 + $0x8] sm:$0xff]
        %s380 = scalar_lea.vmem %s224, 16 [#allocation7]
        %v381 = vld [vmem:[%s380] sm:$0xff]
        %v382 = vld [vmem:[%s380 + $0x8] sm:$0xff]
        %v383 = vsub.f32 %v378, %v381
        %v384 = vsub.f32 %v379, %v382
        %385 = vst.msk [vmem:[#allocation3 + $0x20] sm:$0xff] %vm285, %v383
        %386 = vst.msk [vmem:[#allocation3 + $0x38] sm:$0xff] %vm285, %v384
        %v387 = vld [vmem:[#allocation3 + $0x8] sm:$0x80]
        %v388 = vld [vmem:[#allocation3 + $0x20] sm:$0xff]
        %v389 = vld [vmem:[#allocation3 + $0x38] sm:$0x7f]
        %v393 = vrot.slane %v387, 7
        %v394 = vrot.slane %v388, 7
        %v395 = vsel %vm294, %v393, %v394
        %v396 = vrot.slane %v389, 7
        %v397 = vsel %vm294, %v394, %v396
        %v400 = vsel %vm273, %v395, 0.0
        %v401 = vsel %vm274, %v397, 0.0
        %v402 = vld [vmem:[#allocation3 + $0x20] sm:$0xfe]
        %v403 = vld [vmem:[#allocation3 + $0x38] sm:$0xff]
        %v404 = vld [vmem:[#allocation3 + $0x50] sm:$0x1]
        %v408 = vrot.slane %v402, 1
        %v409 = vrot.slane %v403, 1
        %v410 = vsel %vm310, %v408, %v409
        %v411 = vrot.slane %v404, 1
        %v412 = vsel %vm310, %v409, %v411
        %v415 = vsel %vm275, %v410, 0.0
        %v416 = vsel %vm276, %v412, 0.0
        %v417 = vsub.f32 %v400, %v415
        %v418 = vsub.f32 %v401, %v416
        %419 = vst.msk [vmem:[#allocation3 + $0x20] sm:$0xff] %vm285, %v417
        %420 = vst.msk [vmem:[#allocation3 + $0x38] sm:$0xff] %vm285, %v418
        %v421 = vld [vmem:[#allocation3 + $0x18] sm:$0xff]
        %v422 = vld [vmem:[#allocation3 + $0x20] sm:$0xff]
        %v423 = vld [vmem:[#allocation3 + $0x30] sm:$0xff]
        %v424 = vld [vmem:[#allocation3 + $0x38] sm:$0xff]
        %429 = vrot.lane.b32.xlu0 %v421, 1
        %v430 = vpop.permute.xlu0 %429
        %431 = vrot.lane.b32.xlu0 %v422, 1
        %v432 = vpop.permute.xlu0 %431
        %433 = vrot.lane.b32.xlu0 %v423, 1
        %v434 = vpop.permute.xlu0 %433
        %435 = vrot.lane.b32.xlu0 %v424, 1
        %v436 = vpop.permute.xlu0 %435
        %v437 = vsel %vm344, %v430, %v432
        %v438 = vsel %vm344, %v434, %v436
        %v441 = vsel %vm277, %v437, 0.0
        %v442 = vsel %vm277, %v438, 0.0
        %443 = vrot.lane.b32.xlu0 %v422, 127
        %v444 = vpop.permute.xlu0 %443
        %445 = vrot.lane.b32.xlu0 %v424, 127
        %v446 = vpop.permute.xlu0 %445
        %v449 = vsel %vm278, %v444, 0.0
        %v450 = vsel %vm278, %v446, 0.0
        %v451 = vmul.f32 %v417, 2.0
        %v452 = vmul.f32 %v418, 2.0
        %v453 = vadd.f32 %v441, %v451
        %v454 = vadd.f32 %v442, %v452
        %v455 = vadd.f32 %v453, %v449
        %v456 = vadd.f32 %v454, %v450
        %v457 = vmul.f32 %v266, %v455
        %v458 = vmul.f32 %v267, %v456
        %v459 = vmul.f32 %v457, %v457
        %v460 = vmul.f32 %v458, %v458
        %v461 = vsel %vm285, %v459, 0.0
        %v462 = vsel %vm285, %v460, 0.0
        %v463 = vadd.f32 %v461, %v462
        %464 = vadd.xlane.f32.xlu0 %v463
        %v465 = vpop.xlane.xlu0 %464
        %v466 = vrot.slane %v465, 4
        %v467 = vadd.f32 %v465, %v466
        %v468 = vrot.slane %v467, 2
        %v469 = vadd.f32 %v467, %v468
        %v470 = vrot.slane %v469, 1
        %v471 = vadd.f32 %v469, %v470
        %s472 = vtos %v471
        %v473 = vstv %s376
        %474 = vst [vmem:[%s265] sm:$0xff] %v473
        %v475 = vstv %s472
        %s476 = scalar_lea.vmem %s265, 8 [#allocation10]
        %477 = vst [vmem:[%s476] sm:$0xff] %v475
        %s478 = sand.u32 %s109, 1
        %s479 = scalar_lea.sflag [#allocation6], %s478
        %s480 = sand.u32 %s109, 1
        %s481 = smul.addr %s480, 16
        %s482 = scalar_lea.vmem [#allocation10], %s481
        // Predicated region
        $region45: #{tpu_custom_call.1} parent=31 // pred_check
          %p483 = pneg %p119
        $region46: #{tpu_custom_call.1} parent=31 // pred_check_branch
          %485 = sbr.rel (%p483) target = $region48
        $region47: #{tpu_custom_call.1} parent=31 // pred_region
          %s487 = ssub.s32 256, 256
          %488 = vsyncadd %s479, %s487
          %s489 = smul.addr %s23, 2
          %s490 = smul.addr %s489, 128
          %s491 = scalar_lea.hbm %s3, %s490
          %s492 = sshll.u32 %s482, 4
          %s493 = int_to_ptr.vmem [resolvable:$true] %s492
          %498 = dma.vmem_to_hbm [thread:$0]  %s493, 256, %s491, %s479, 128, 128, 8
        $region48: #{tpu_custom_call.1} parent=31 // pred_fallthru
          _
      $region32: #{tpu_custom_call.1} parent=5 // pred_fallthru
        _
      %p499 = scmp.le.s32.totalorder 2, %s18
      // Predicated region
      $region49: #{tpu_custom_call.1} parent=5 // pred_check
        %p500 = pneg %p499
      $region50: #{tpu_custom_call.1} parent=5 // pred_check_branch
        %502 = sbr.rel (%p500) target = $region52
      $region51: #{tpu_custom_call.1} parent=5 // pred_region
        %s503 = ssub.s32 %s18, 2
        // Predicated region
        $region53: #{tpu_custom_call.1} parent=51 // pred_check
          %p504 = pneg %p125
        $region54: #{tpu_custom_call.1} parent=51 // pred_check_branch
          %506 = sbr.rel (%p504) target = $region56
        $region55: #{tpu_custom_call.1} parent=51 // pred_region
          %s507 = sand.u32 %s110, 1
          %s508 = scalar_lea.sflag [#allocation6], %s507
          %s509 = sand.u32 %s110, 1
          %s510 = smul.addr %s509, 16
          %s511 = scalar_lea.vmem [#allocation10], %s510
          %512 = dma.done %s508, 256
        $region56: #{tpu_custom_call.1} parent=51 // pred_fallthru
          _
      $region52: #{tpu_custom_call.1} parent=5 // pred_fallthru
        _
    $region6: #{tpu_custom_call.1} parent=1 // loop_footer
      %s22 = sadd.s32 1, %s18
    $region7: #{tpu_custom_call.1} parent=1 // loop_footer_branch
      %17 = sbr.rel target = $region3
    $region8: #{tpu_custom_call.1} parent=1 // loop_exit
      _
    %513 = vsyncpa [#allocation5], 1
    %s514 = scalar_lea.sflag [#allocation5], 1
    %515 = vsyncpa %s514, 1
    %516 = vsyncpa [#allocation8], 1
    %s517 = scalar_lea.sflag [#allocation8], 1
    %518 = vsyncpa %s517, 1
    %519 = vsyncpa [#allocation6], 1
    %s520 = scalar_lea.sflag [#allocation6], 1
    %521 = vsyncpa %s520, 1

</llo_original>
